<compile_context>
chip_gen: v6e
topology: v6e:2x2x1
jax: 0.10.0
libtpu: 0.0.40
codegen_flags: <defaults>
</compile_context>

<pallas_src>
import jax
import jax.numpy as jnp
from jax.experimental import pallas as pl
from jax.experimental.pallas import tpu as pltpu


def pos_embed_kernel(wpos_ref, out_ref):
    # wpos_ref: (bs, D)   -- rows of W_pos for the current seq tile
    # out_ref : (bb, bs, D) -- output block; broadcast the rows across the batch tile
    out_ref[...] = jnp.broadcast_to(wpos_ref[...], out_ref.shape).astype(out_ref.dtype)


def _pick_tile(n, candidates):
    """Largest candidate that divides n (falls back to n itself)."""
    for c in candidates:
        if c <= n and n % c == 0:
            return c
    return n


def pos_embed(tokens, W_pos):
    """Pallas equivalent of PosEmbed.forward.

    tokens: int[batch, seq]  (values unused, only the shape matters -- same as the module)
    W_pos : float[n_ctx, d_model]
    returns float[batch, seq, d_model] = W_pos[:seq] broadcast over batch.
    """
    B, S = tokens.shape
    n_ctx, D = W_pos.shape
    assert S <= n_ctx, "seq_len must not exceed n_ctx"

    # Seq tile: keep it a multiple of 8 (sublane granularity); lane dim stays the full D.
    bs = _pick_tile(S, (1024, 512, 256, 128, 64, 32, 16, 8))
    # TODO(synk): seq lengths that are not a multiple of 8 (and != n_ctx) would need padding.

    # Batch tile: target >= ~1 MiB per output block to amortize per-grid-step overhead.
    itemsize = jnp.dtype(W_pos.dtype).itemsize
    target_rows = max(1, (1 << 20) // max(1, bs * D * itemsize))
    bb = _pick_tile(B, tuple(t for t in (256, 128, 64, 32, 16, 8, 4, 2, 1)
                             if t <= target_rows))

    # Batch innermost so the W_pos tile's block index is unchanged across consecutive
    # steps (Pallas skips the redundant input DMA) and the output writeback streams.
    grid = (S // bs, B // bb)

    return pl.pallas_call(
        pos_embed_kernel,
        out_shape=jax.ShapeDtypeStruct((B, S, D), W_pos.dtype),
        grid_spec=pltpu.PrefetchScalarGridSpec(
            num_scalar_prefetch=0,
            grid=grid,
            in_specs=[pl.BlockSpec((bs, D), lambda js, ib: (js, 0))],
            out_specs=pl.BlockSpec((bb, bs, D), lambda js, ib: (ib, js, 0)),
        ),
        compiler_params=pltpu.CompilerParams(
            dimension_semantics=("parallel", "parallel")),
    )(W_pos)


def reference_pos_embed(tokens, W_pos):
    B, S = tokens.shape
    return jnp.broadcast_to(W_pos[:S][None, :, :], (B, S, W_pos.shape[1]))


if __name__ == "__main__":
    # Small shapes consistent with the module: batch=2, seq=8, n_ctx=16, d_model=32.
    B, S, N_CTX, D = 2, 8, 16, 32
    init_range = 0.02

    key = jax.random.PRNGKey(0)
    k_tok, k_pos = jax.random.split(key)

    tokens = jax.random.randint(k_tok, (B, S), 0, 100, dtype=jnp.int32)
    W_pos = init_range * jax.random.normal(k_pos, (N_CTX, D), jnp.float32)

    out = pos_embed(tokens, W_pos)
    out = jax.block_until_ready(out)

    ref = reference_pos_embed(tokens, W_pos)
    assert out.shape == (B, S, D), f"bad shape {out.shape}"
    max_err = float(jnp.max(jnp.abs(out - ref)))
    assert jnp.allclose(out, ref), f"max abs err {max_err}"

    print("KERNEL_OK")
</pallas_src>

<mosaic_0001>
module attributes {stable_mosaic.version = 11 : i64} {
  func.func @pos_embed_kernel(%arg0: i32, %arg1: i32, %arg2: memref<8x32xf32, #tpu.memory_space<vmem>>, %arg3: memref<2x8x32xf32, #tpu.memory_space<vmem>>) attributes {dimension_semantics = [#tpu.dimension_semantics<parallel>, #tpu.dimension_semantics<parallel>], iteration_bounds = array<i64: 1, 1>, scalar_prefetch = 0 : i64, scratch_operands = 0 : i64, tpu.core_type = #tpu.core_type<tc>, window_params = [{transform_indices = @transform_0, window_bounds = array<i64: 8, 32>}, {transform_indices = @transform_1, window_bounds = array<i64: 2, 8, 32>}]} {
    %c0 = arith.constant 0 : index
    %c0_0 = arith.constant 0 : index
    %0 = vector.load %arg2[%c0, %c0_0] : memref<8x32xf32, #tpu.memory_space<vmem>>, vector<8x32xf32>
    %1 = vector.shape_cast %0 : vector<8x32xf32> to vector<1x8x32xf32>
    %2 = vector.broadcast %1 : vector<1x8x32xf32> to vector<2x8x32xf32>
    %c0_1 = arith.constant 0 : index
    %c0_2 = arith.constant 0 : index
    %c0_3 = arith.constant 0 : index
    %3 = vector.load %arg3[%c0_1, %c0_2, %c0_3] : memref<2x8x32xf32, #tpu.memory_space<vmem>>, vector<2x8x32xf32>
    tpu.vector_store %arg3[%c0_1, %c0_2, %c0_3], %2 {strides = array<i32>} : memref<2x8x32xf32, #tpu.memory_space<vmem>>, vector<2x8x32xf32>,
    return
  }
  func.func @transform_0(%arg0: i32, %arg1: i32) -> (i32, i32) {
    %c0_i32 = arith.constant 0 : i32
    %c0_i32_0 = arith.constant 0 : i32
    return %arg0, %c0_i32 : i32, i32
  }
  func.func @transform_1(%arg0: i32, %arg1: i32) -> (i32, i32, i32) {
    %c0_i32 = arith.constant 0 : i32
    %c0_i32_0 = arith.constant 0 : i32
    return %arg1, %arg0, %c0_i32 : i32, i32, i32
  }
}

</mosaic_0001>

<llo_original>
// kernel: tpu_custom_call.1
$region0: #{tpu_custom_call.1}
  #allocation0 [shape = 'u32[]', space=smem, size = 0x4, offset = 0x4, fixed_abs, tag = 'smem constant byte address 0x4 - core index']
  #allocation1 [shape = 'u32[144,128]{1,0:T(1,128)}', space=vmem, size = 0x12000, scoped, tag = 'internal scratch']
  %s0 = inlined_call_operand.hbm [shape: f32[16,32], index: 0, kind: input, shape index: {}]
  %s1 = inlined_call_operand.hbm [shape: f32[2,8,32], index: 1, kind: output, shape index: {}]
  %s2 = sld [smem:[#allocation0]]
  $region18: #{tpu_custom_call.1} parent=0
    _
  %s4 = ssub.s32 1, %s2
  %s5 = scalar_select 0, %s4, %s2
  $region1: #{tpu_custom_call.1} parent=0
    #allocation2 [shape = 'u8[4096]{0}', space=vmem, size = 0x1000, scoped, tag = 'input window, operand 0, single buffered']
    #allocation3 [shape = 's32[1]{0}', space=sflag, size = 0x4, scoped, tag = 'scoped memory for tpu_custom_call.1']
    #allocation4 [shape = 's32[1]{0}', space=sflag, size = 0x4, scoped, tag = 'scoped memory for tpu_custom_call.1']
    #allocation5 [shape = 'u8[8192]{0}', space=vmem, size = 0x2000, scoped, tag = 'output window, operand 0, single buffered']
    %6 = vsyncpa [#allocation3], 0
    %7 = vsyncpa [#allocation4], 0
    // Predicated region
    $region2: #{tpu_custom_call.1} parent=1 // pred_check
      _
    $region3: #{tpu_custom_call.1} parent=1 // pred_check_branch
      %9 = sbr.rel (0) target = $region5
    $region4: #{tpu_custom_call.1} parent=1 // pred_region
      %s11 = ssub.s32 128, 128
      %12 = vsyncadd [#allocation3], %s11
      %s14 = sshll.u32 [#allocation2], 4
      %s15 = int_to_ptr.vmem [resolvable:$true] %s14
      %17 = dma.hbm_to_vmem [thread:$0]  %s0, 128, %s15, [#allocation3]
    $region5: #{tpu_custom_call.1} parent=1 // pred_fallthru
      _
    // Predicated region
    $region6: #{tpu_custom_call.1} parent=1 // pred_check
      _
    $region7: #{tpu_custom_call.1} parent=1 // pred_check_branch
      %19 = sbr.rel (0) target = $region9
    $region8: #{tpu_custom_call.1} parent=1 // pred_region
      %20 = dma.done [#allocation3], 128
    $region9: #{tpu_custom_call.1} parent=1 // pred_fallthru
      _
    %v21 = vld [vmem:[#allocation2] sm:$0xff]
    %vm22 = vcmask 261120
    %23 = vst.msk [vmem:[#allocation5] sm:$0xff] %vm22, %v21
    %24 = vst.msk [vmem:[#allocation5 + $0x8] sm:$0xff] %vm22, %v21
    // Predicated region
    $region10: #{tpu_custom_call.1} parent=1 // pred_check
      _
    $region11: #{tpu_custom_call.1} parent=1 // pred_check_branch
      %26 = sbr.rel (0) target = $region13
    $region12: #{tpu_custom_call.1} parent=1 // pred_region
      %s28 = ssub.s32 256, 256
      %29 = vsyncadd [#allocation4], %s28
      %s30 = sshll.u32 [#allocation5], 4
      %s31 = int_to_ptr.vmem [resolvable:$true] %s30
      %36 = dma.vmem_to_hbm [thread:$0]  %s31, 256, %s1, [#allocation4], 128, 128, 8
    $region13: #{tpu_custom_call.1} parent=1 // pred_fallthru
      _
    // Predicated region
    $region14: #{tpu_custom_call.1} parent=1 // pred_check
      _
    $region15: #{tpu_custom_call.1} parent=1 // pred_check_branch
      %38 = sbr.rel (0) target = $region17
    $region16: #{tpu_custom_call.1} parent=1 // pred_region
      %39 = dma.done [#allocation4], 256
    $region17: #{tpu_custom_call.1} parent=1 // pred_fallthru
      _
    %40 = vsyncpa [#allocation3], 1
    %41 = vsyncpa [#allocation4], 1

</llo_original>
